<compile_context>
chip_gen: v5e
topology: v5e:2x2
jax: 0.10.0
libtpu: 0.0.40
codegen_flags: <defaults>
</compile_context>

<pallas_src>
import jax
import jax.numpy as jnp
from jax.experimental import pallas as pl
from jax.experimental.pallas import tpu as pltpu


def adapter_kernel(x_ref, w_ref, b_ref, o_ref):
    # One lane-dense affine map: (TM, 128) @ (128, 128) + (1, 128)
    y = jnp.dot(x_ref[...], w_ref[...], preferred_element_type=jnp.float32)
    o_ref[...] = (y + b_ref[...]).astype(o_ref.dtype)


def bi_direct_adapter_pallas(x, w_down, b_down, w_mid, b_mid, w_up, b_up,
                             *, block_rows=1024):
    """x: (B, N, 64) f32. Weights in PyTorch nn.Linear layout (out, in).

    block_rows counts *packed* rows (each packed row = 2 tokens = 128 lanes).
    """
    B, N, C = x.shape
    dim = w_down.shape[0]
    assert w_down.shape == (dim, C)
    assert w_mid.shape == (dim, dim)
    assert w_up.shape == (C, dim)

    # --- Collapse the three Linears into one affine map (eval mode exact). ---
    # TODO(synk): nn.Dropout(0.1) is identity in eval mode; training-mode
    # stochastic masking (pltpu.prng_*) is not implemented here and would also
    # forbid this collapse.
    wd_t = w_down.T                      # (C,   dim)
    wm_t = w_mid.T                       # (dim, dim)
    wu_t = w_up.T                        # (dim, C)
    w_eff = wd_t @ wm_t @ wu_t           # (C, C) = (64, 64)
    b_eff = (b_down @ wm_t + b_mid) @ wu_t + b_up          # (64,)

    # --- Lane-dense packing: view 2 tokens as one 128-wide row. -------------
    M = B * N
    xf = x.reshape(M, C)
    pad = (-M) % 2
    if pad:
        xf = jnp.pad(xf, ((0, pad), (0, 0)))
    Mp = M + pad
    M2 = Mp // 2
    x2 = xf.reshape(M2, 2 * C)                              # (M/2, 128)

    # Block-diagonal weight acts on [x_{2r} | x_{2r+1}] independently.
    w_big = jnp.kron(jnp.eye(2, dtype=w_eff.dtype), w_eff)  # (128, 128)
    b_big = jnp.tile(b_eff.reshape(1, C), (1, 2))           # (1, 128)

    tm2 = min(block_rows, M2)
    if tm2 < M2:
        tm2 = max(8, (tm2 // 8) * 8)     # sublane-aligned partial tile
    grid = (pl.cdiv(M2, tm2),)

    const = lambda i: (0, 0)
    out2 = pl.pallas_call(
        adapter_kernel,
        out_shape=jax.ShapeDtypeStruct((M2, 2 * C), x.dtype),
        grid_spec=pltpu.PrefetchScalarGridSpec(
            num_scalar_prefetch=0,
            grid=grid,
            in_specs=[
                pl.BlockSpec((tm2, 2 * C), lambda i: (i, 0)),   # packed x rows
                pl.BlockSpec((2 * C, 2 * C), const),            # W_eff blockdiag
                pl.BlockSpec((1, 2 * C), const),                # b_eff tiled
            ],
            out_specs=pl.BlockSpec((tm2, 2 * C), lambda i: (i, 0)),
        ),
        compiler_params=pltpu.CompilerParams(
            dimension_semantics=("parallel",)),
    )(x2, w_big, b_big)

    out = out2.reshape(Mp, C)[:M]
    return out.reshape(B, N, C)


def reference(x, w_down, b_down, w_mid, b_mid, w_up, b_up):
    """Pure-JAX reference mirroring the PyTorch op ordering (eval mode)."""
    d = jnp.einsum("bnc,dc->bnd", x, w_down) + b_down
    m = jnp.einsum("bnd,ed->bne", d, w_mid) + b_mid
    u = jnp.einsum("bne,ce->bnc", m, w_up) + b_up
    return u


if __name__ == "__main__":
    # Small shapes consistent with the module: tokens (B=2, N=64, C=64), dim=32.
    # block_rows=32 packed rows -> grid of 2 parallel steps (keeps both v7x
    # TensorCores busy even at this tiny size); production sizes use the
    # default 1024-row tiles.
    B, N, C, dim = 2, 64, 64, 32

    key = jax.random.PRNGKey(0)
    ks = jax.random.split(key, 7)

    x = jax.random.normal(ks[0], (B, N, C), jnp.float32)

    # NOTE: the PyTorch module zero-initializes all adapter weights (output
    # would be identically zero); random parameters are used here so the
    # correctness check is meaningful. Forward math is unchanged.
    w_down = 0.2 * jax.random.normal(ks[1], (dim, C), jnp.float32)
    b_down = 0.1 * jax.random.normal(ks[2], (dim,), jnp.float32)
    w_mid = 0.2 * jax.random.normal(ks[3], (dim, dim), jnp.float32)
    b_mid = 0.1 * jax.random.normal(ks[4], (dim,), jnp.float32)
    w_up = 0.2 * jax.random.normal(ks[5], (C, dim), jnp.float32)
    b_up = 0.1 * jax.random.normal(ks[6], (C,), jnp.float32)

    out = bi_direct_adapter_pallas(x, w_down, b_down, w_mid, b_mid, w_up, b_up,
                                   block_rows=32)
    out = jax.block_until_ready(out)

    ref = reference(x, w_down, b_down, w_mid, b_mid, w_up, b_up)
    assert out.shape == (B, N, C)
    # Collapsed affine map changes float summation order -> tolerance check.
    assert jnp.allclose(out, ref, atol=1e-4, rtol=1e-4), "mismatch vs reference"

    print("KERNEL_OK")
</pallas_src>

<mosaic_0001>
module attributes {stable_mosaic.version = 11 : i64} {
  func.func @adapter_kernel(%arg0: i32, %arg1: memref<32x128xf32, #tpu.memory_space<vmem>>, %arg2: memref<128x128xf32, #tpu.memory_space<vmem>>, %arg3: memref<1x128xf32, #tpu.memory_space<vmem>>, %arg4: memref<32x128xf32, #tpu.memory_space<vmem>>) attributes {dimension_semantics = [#tpu.dimension_semantics<parallel>], iteration_bounds = array<i64: 2>, scalar_prefetch = 0 : i64, scratch_operands = 0 : i64, tpu.core_type = #tpu.core_type<tc>, window_params = [{transform_indices = @transform_0, window_bounds = array<i64: 32, 128>}, {pipeline_mode = #tpu.pipeline_mode<synchronous>, transform_indices = @transform_1, window_bounds = array<i64: 128, 128>}, {pipeline_mode = #tpu.pipeline_mode<synchronous>, transform_indices = @transform_2, window_bounds = array<i64: 1, 128>}, {transform_indices = @transform_3, window_bounds = array<i64: 32, 128>}]} {
    %c0 = arith.constant 0 : index
    %c0_0 = arith.constant 0 : index
    %0 = vector.load %arg1[%c0, %c0_0] : memref<32x128xf32, #tpu.memory_space<vmem>>, vector<32x128xf32>
    %c0_1 = arith.constant 0 : index
    %c0_2 = arith.constant 0 : index
    %1 = vector.load %arg2[%c0_1, %c0_2] : memref<128x128xf32, #tpu.memory_space<vmem>>, vector<128x128xf32>
    %cst = arith.constant dense<0.000000e+00> : vector<32x128xf32>
    %2 = tpu.matmul %0, %1, %cst {dimension_numbers = #tpu.dot_dimension_numbers<[1], [0], [0], [1], [0, 0, 1, 1], [], []>} : vector<32x128xf32>, vector<128x128xf32>, vector<32x128xf32> -> vector<32x128xf32>
    %c0_3 = arith.constant 0 : index
    %c0_4 = arith.constant 0 : index
    %3 = vector.load %arg3[%c0_3, %c0_4] : memref<1x128xf32, #tpu.memory_space<vmem>>, vector<1x128xf32>
    %4 = vector.broadcast %3 : vector<1x128xf32> to vector<32x128xf32>
    %5 = arith.addf %2, %4 : vector<32x128xf32>
    %c0_5 = arith.constant 0 : index
    %c0_6 = arith.constant 0 : index
    %6 = vector.load %arg4[%c0_5, %c0_6] : memref<32x128xf32, #tpu.memory_space<vmem>>, vector<32x128xf32>
    tpu.vector_store %arg4[%c0_5, %c0_6], %5 {strides = array<i32>} : memref<32x128xf32, #tpu.memory_space<vmem>>, vector<32x128xf32>,
    return
  }
  func.func @transform_0(%arg0: i32) -> (i32, i32) {
    %c0_i32 = arith.constant 0 : i32
    %c0_i32_0 = arith.constant 0 : i32
    return %arg0, %c0_i32 : i32, i32
  }
  func.func @transform_1(%arg0: i32) -> (i32, i32) {
    %c0_i32 = arith.constant 0 : i32
    %c0_i32_0 = arith.constant 0 : i32
    %c0_i32_1 = arith.constant 0 : i32
    return %c0_i32, %c0_i32_0 : i32, i32
  }
  func.func @transform_2(%arg0: i32) -> (i32, i32) {
    %c0_i32 = arith.constant 0 : i32
    %c0_i32_0 = arith.constant 0 : i32
    %c0_i32_1 = arith.constant 0 : i32
    return %c0_i32, %c0_i32_0 : i32, i32
  }
  func.func @transform_3(%arg0: i32) -> (i32, i32) {
    %c0_i32 = arith.constant 0 : i32
    %c0_i32_0 = arith.constant 0 : i32
    return %arg0, %c0_i32 : i32, i32
  }
}

</mosaic_0001>

<llo_original>
// kernel: tpu_custom_call.1
$region0: #{tpu_custom_call.1}
  #allocation0 [shape = 'u32[]', space=smem, size = 0x4, offset = 0x4, fixed_abs, tag = 'smem constant byte address 0x4 - core index']
  #allocation1 [shape = 'u32[72,128]{1,0:T(1,128)}', space=vmem, size = 0x9000, scoped, tag = 'internal scratch']
  %s0 = inlined_call_operand.hbm [shape: f32[64,128], index: 0, kind: input, shape index: {}]
  %s1 = inlined_call_operand.hbm [shape: f32[128,128], index: 1, kind: input, shape index: {}]
  %s2 = inlined_call_operand.vmem [shape: f32[1,128], index: 2, kind: input, shape index: {}]
  %s3 = inlined_call_operand.hbm [shape: f32[64,128], index: 3, kind: output, shape index: {}]
  %s4 = sld [smem:[#allocation0]]
  $region53: #{tpu_custom_call.1} parent=0
    _
  %s6 = ssub.s32 1, %s4
  %s7 = scalar_select 0, %s6, %s4
  $region1: #{tpu_custom_call.1} parent=0
    #allocation2 [shape = 'u8[32768]{0}', space=vmem, size = 0x8000, scoped, tag = 'input window, operand 0']
    #allocation3 [shape = 's32[2]{0}', space=sflag, size = 0x8, scoped, tag = 'scoped memory for tpu_custom_call.1']
    #allocation4 [shape = 's32[2]{0}', space=sflag, size = 0x8, scoped, tag = 'scoped memory for tpu_custom_call.1']
    #allocation5 [shape = 'u8[65536]{0}', space=vmem, size = 0x10000, scoped, tag = 'input window, operand 1, single buffered']
    #allocation6 [shape = 's32[1]{0}', space=sflag, size = 0x4, scoped, tag = 'scoped memory for tpu_custom_call.1']
    #allocation7 [shape = 'u8[32768]{0}', space=vmem, size = 0x8000, scoped, tag = 'output window, operand 0']
    %8 = vsyncpa [#allocation3], 0
    %s9 = scalar_lea.sflag [#allocation3], 1
    %10 = vsyncpa %s9, 0
    %11 = vsyncpa [#allocation6], 0
    %12 = vsyncpa [#allocation4], 0
    %s13 = scalar_lea.sflag [#allocation4], 1
    %14 = vsyncpa %s13, 0
    loop: start=0, step=1, limit=4
    $region2: #{tpu_custom_call.1} parent=1 // loop_pre_header
      _
    $region3: #{tpu_custom_call.1} parent=1 // loop_header
      %s16 = sphi 0, %s20
      %p17 = scmp.ge.s32.totalorder %s16, 4
      %s26 = sphi 0, %s28
      %s29 = sphi 0, %s26
      %s30 = sphi 0, %s29
      %s46 = sphi 0, %s30
      %s50 = sphi 0, %s50
      %s52 = sphi 0, %s50
      %s53 = sphi 0, %s52
      %s67 = sphi 0, %s53
      %s71 = sphi 0, %s71
      %s73 = sphi 0, %s71
      %s74 = sphi 0, %s73
      %s88 = sphi 0, %s74
      %s94 = sphi 0, %s96
      %s97 = sphi 0, %s94
      %s98 = sphi 0, %s97
      %s114 = sphi 0, %s98
    $region4: #{tpu_custom_call.1} parent=1 // loop_header_branch
      %19 = sbr.rel (%p17) target = $region8
    $region5: #{tpu_custom_call.1} parent=1 // loop_body
      %s21 = ssub.s32 %s16, 1
      %s22 = ssub.s32 %s16, 2
      %s23 = sadd.s32 %s16, 1
      %s24 = ssub.s32 %s16, %s23
      %p25 = scmp.eq.s32.totalorder %s24, 0
      %s27 = sadd.s32 %s26, 1
      %s28 = scalar_select %p25, %s26, %s27
      %p31 = pneg %p25
      %p32 = scmp.eq.s32.totalorder %s16, 1
      %p33 = por %p31, %p32
      %p34 = scmp.ne.s32.totalorder %s26, %s29
      %p35 = scmp.eq.s32.totalorder %s16, 0
      %p36 = por %p34, %p35
      %p37 = scmp.ne.s32.totalorder %s26, %s29
      %p38 = scmp.eq.s32.totalorder %s21, 1
      %p39 = por %p37, %p38
      %p40 = scmp.ne.s32.totalorder %s29, %s30
      %p41 = scmp.eq.s32.totalorder %s21, 0
      %p42 = por %p40, %p41
      %p43 = scmp.ne.s32.totalorder %s29, %s30
      %p44 = scmp.eq.s32.totalorder %s22, 1
      %p45 = por %p43, %p44
      %p47 = scmp.ne.s32.totalorder %s30, %s46
      %p48 = scmp.eq.s32.totalorder %s22, 0
      %p49 = por %p47, %p48
      %s51 = sadd.s32 %s50, 1
      %p54 = scmp.eq.s32.totalorder %s16, 1
      %p55 = scmp.ne.s32.totalorder %s50, %s52
      %p56 = scmp.eq.s32.totalorder %s16, 0
      %p57 = por %p55, %p56
      %p58 = scmp.ne.s32.totalorder %s50, %s52
      %p59 = scmp.eq.s32.totalorder %s21, 1
      %p60 = por %p58, %p59
      %p61 = scmp.ne.s32.totalorder %s52, %s53
      %p62 = scmp.eq.s32.totalorder %s21, 0
      %p63 = por %p61, %p62
      %p64 = scmp.ne.s32.totalorder %s52, %s53
      %p65 = scmp.eq.s32.totalorder %s22, 1
      %p66 = por %p64, %p65
      %p68 = scmp.ne.s32.totalorder %s53, %s67
      %p69 = scmp.eq.s32.totalorder %s22, 0
      %p70 = por %p68, %p69
      %s72 = sadd.s32 %s71, 1
      %p75 = scmp.eq.s32.totalorder %s16, 1
      %p76 = scmp.ne.s32.totalorder %s71, %s73
      %p77 = scmp.eq.s32.totalorder %s16, 0
      %p78 = por %p76, %p77
      %p79 = scmp.ne.s32.totalorder %s71, %s73
      %p80 = scmp.eq.s32.totalorder %s21, 1
      %p81 = por %p79, %p80
      %p82 = scmp.ne.s32.totalorder %s73, %s74
      %p83 = scmp.eq.s32.totalorder %s21, 0
      %p84 = por %p82, %p83
      %p85 = scmp.ne.s32.totalorder %s73, %s74
      %p86 = scmp.eq.s32.totalorder %s22, 1
      %p87 = por %p85, %p86
      %p89 = scmp.ne.s32.totalorder %s74, %s88
      %p90 = scmp.eq.s32.totalorder %s22, 0
      %p91 = por %p89, %p90
      %s92 = ssub.s32 %s16, %s23
      %p93 = scmp.eq.s32.totalorder %s92, 0
      %s95 = sadd.s32 %s94, 1
      %s96 = scalar_select %p93, %s94, %s95
      %p99 = pneg %p93
      %p100 = scmp.eq.s32.totalorder %s16, 1
      %p101 = por %p99, %p100
      %p102 = scmp.ne.s32.totalorder %s94, %s97
      %p103 = scmp.eq.s32.totalorder %s16, 0
      %p104 = por %p102, %p103
      %p105 = scmp.ne.s32.totalorder %s94, %s97
      %p106 = scmp.eq.s32.totalorder %s21, 1
      %p107 = por %p105, %p106
      %p108 = scmp.ne.s32.totalorder %s97, %s98
      %p109 = scmp.eq.s32.totalorder %s21, 0
      %p110 = por %p108, %p109
      %p111 = scmp.ne.s32.totalorder %s97, %s98
      %p112 = scmp.eq.s32.totalorder %s22, 1
      %p113 = por %p111, %p112
      %p115 = scmp.ne.s32.totalorder %s98, %s114
      %p116 = scmp.eq.s32.totalorder %s22, 0
      %p117 = por %p115, %p116
      %p118 = scmp.le.s32.totalorder 1, %s16
      %p119 = scmp.lt.s32.totalorder %s16, 3
      %p120 = pnand %p118, %p119
      %p121 = pneg %p120
      // Predicated region
      $region9: #{tpu_custom_call.1} parent=5 // pred_check
        _
      $region10: #{tpu_custom_call.1} parent=5 // pred_check_branch
        %123 = sbr.rel (%p120) target = $region12
      $region11: #{tpu_custom_call.1} parent=5 // pred_region
        %s124 = ssub.s32 %s16, 1
        // Predicated region
        $region13: #{tpu_custom_call.1} parent=11 // pred_check
          %p125 = pneg %p63
        $region14: #{tpu_custom_call.1} parent=11 // pred_check_branch
          %127 = sbr.rel (%p125) target = $region16
        $region15: #{tpu_custom_call.1} parent=11 // pred_region
          %129 = vsyncadd [#allocation6], 0
          %s130 = sshll.u32 %s1, 4
          %s131 = int_to_ptr.hbm [resolvable:$true] %s130
          %s132 = sshll.u32 [#allocation5], 4
          %s133 = int_to_ptr.vmem [resolvable:$true] %s132
          %138 = dma.hbm_to_vmem [thread:$0]  %s131, 2048, %s133, [#allocation6], 128, 128, 8
        $region16: #{tpu_custom_call.1} parent=11 // pred_fallthru
          _
        // Predicated region
        $region17: #{tpu_custom_call.1} parent=11 // pred_check
          %p139 = pneg %p84
        $region18: #{tpu_custom_call.1} parent=11 // pred_check_branch
          %141 = sbr.rel (%p139) target = $region20
        $region19: #{tpu_custom_call.1} parent=11 // pred_region
          _
        $region20: #{tpu_custom_call.1} parent=11 // pred_fallthru
          _
      $region12: #{tpu_custom_call.1} parent=5 // pred_fallthru
        _
      %p142 = scmp.lt.s32.totalorder %s16, 2
      // Predicated region
      $region21: #{tpu_custom_call.1} parent=5 // pred_check
        %p143 = pneg %p142
      $region22: #{tpu_custom_call.1} parent=5 // pred_check_branch
        %145 = sbr.rel (%p143) target = $region24
      $region23: #{tpu_custom_call.1} parent=5 // pred_region
        // Predicated region
        $region25: #{tpu_custom_call.1} parent=23 // pred_check
          %p146 = pneg %p36
        $region26: #{tpu_custom_call.1} parent=23 // pred_check_branch
          %148 = sbr.rel (%p146) target = $region28
        $region27: #{tpu_custom_call.1} parent=23 // pred_region
          %s149 = sand.u32 %s26, 1
          %s150 = scalar_lea.sflag [#allocation3], %s149
          %s151 = sand.u32 %s26, 1
          %s152 = smul.addr %s151, 32
          %s153 = scalar_lea.vmem [#allocation2], %s152
          %s154 = smul.u32 4, %s16
          %156 = vsyncadd %s150, 0
          %s157 = smul.addr %s154, 8
          %s158 = scalar_lea.hbm %s0, %s157
          %s159 = sshll.u32 %s158, 4
          %s160 = int_to_ptr.hbm [resolvable:$true] %s159
          %s161 = sshll.u32 %s153, 4
          %s162 = int_to_ptr.vmem [resolvable:$true] %s161
          %167 = dma.hbm_to_vmem [thread:$0]  %s160, 512, %s162, %s150, 128, 128, 8
        $region28: #{tpu_custom_call.1} parent=23 // pred_fallthru
          _
      $region24: #{tpu_custom_call.1} parent=5 // pred_fallthru
        _
      %p168 = scmp.le.s32.totalorder 1, %s16
      %p169 = scmp.lt.s32.totalorder %s16, 3
      %p170 = pnand %p168, %p169
      %p171 = pneg %p170
      // Predicated region
      $region29: #{tpu_custom_call.1} parent=5 // pred_check
        _
      $region30: #{tpu_custom_call.1} parent=5 // pred_check_branch
        %173 = sbr.rel (%p170) target = $region32
      $region31: #{tpu_custom_call.1} parent=5 // pred_region
        %s174 = ssub.s32 %s16, 1
        %s175 = sand.u32 %s29, 1
        %s176 = scalar_lea.sflag [#allocation3], %s175
        %s177 = sand.u32 %s29, 1
        %s178 = smul.addr %s177, 32
        %s179 = scalar_lea.vmem [#allocation2], %s178
        // Predicated region
        $region33: #{tpu_custom_call.1} parent=31 // pred_check
          %p180 = pneg %p42
        $region34: #{tpu_custom_call.1} parent=31 // pred_check_branch
          %182 = sbr.rel (%p180) target = $region36
        $region35: #{tpu_custom_call.1} parent=31 // pred_region
          %184 = dma.done %s176, 512
        $region36: #{tpu_custom_call.1} parent=31 // pred_fallthru
          _
        // Predicated region
        $region37: #{tpu_custom_call.1} parent=31 // pred_check
          %p185 = pneg %p63
        $region38: #{tpu_custom_call.1} parent=31 // pred_check_branch
          %187 = sbr.rel (%p185) target = $region40
        $region39: #{tpu_custom_call.1} parent=31 // pred_region
          %189 = dma.done [#allocation6], 2048
        $region40: #{tpu_custom_call.1} parent=31 // pred_fallthru
          _
        %s190 = sand.u32 %s29, 1
        %s191 = scalar_lea.sflag [#allocation3], %s190
        %s192 = sand.u32 %s29, 1
        %s193 = smul.addr %s192, 32
        %s194 = scalar_lea.vmem [#allocation2], %s193
        %p195 = pneg %p42
        %p196 = pneg %p39
        %p197 = pneg %p63
        %p198 = pneg %p60
        %p199 = pneg %p84
        %p200 = pneg %p81
        %p201 = pneg %p110
        %p202 = pneg %p107
        %s203 = sand.u32 %s97, 1
        %s204 = scalar_lea.sflag [#allocation4], %s203
        %s205 = sand.u32 %s97, 1
        %s206 = smul.addr %s205, 32
        %s207 = scalar_lea.vmem [#allocation7], %s206
        %s208 = smul.u32 4, %s21
        %s209 = smul.u32 4, %s21
        %v210 = vld [vmem:[%s179] sm:$0xff]
        %v211 = vld [vmem:[%s179 + $0x8] sm:$0xff]
        %v212 = vld [vmem:[%s179 + $0x10] sm:$0xff]
        %v213 = vld [vmem:[%s179 + $0x18] sm:$0xff]
        %v214 = vld [vmem:[#allocation5] sm:$0xff]
        %v215 = vld [vmem:[#allocation5 + $0x8] sm:$0xff]
        %v216 = vld [vmem:[#allocation5 + $0x10] sm:$0xff]
        %v217 = vld [vmem:[#allocation5 + $0x18] sm:$0xff]
        %v218 = vld [vmem:[#allocation5 + $0x20] sm:$0xff]
        %v219 = vld [vmem:[#allocation5 + $0x28] sm:$0xff]
        %v220 = vld [vmem:[#allocation5 + $0x30] sm:$0xff]
        %v221 = vld [vmem:[#allocation5 + $0x38] sm:$0xff]
        %v222 = vld [vmem:[#allocation5 + $0x40] sm:$0xff]
        %v223 = vld [vmem:[#allocation5 + $0x48] sm:$0xff]
        %v224 = vld [vmem:[#allocation5 + $0x50] sm:$0xff]
        %v225 = vld [vmem:[#allocation5 + $0x58] sm:$0xff]
        %v226 = vld [vmem:[#allocation5 + $0x60] sm:$0xff]
        %v227 = vld [vmem:[#allocation5 + $0x68] sm:$0xff]
        %v228 = vld [vmem:[#allocation5 + $0x70] sm:$0xff]
        %v229 = vld [vmem:[#allocation5 + $0x78] sm:$0xff]
        %v230 = vld [vmem:[%s2] sm:$0x1]
        %v232 = vperm.slane %v230, 0
        %234 = vmatpush.msra.mxu0 %v229
        %235 = vmatpush.msra.mxu0 %v228
        %236 = vmatpush.msra.mxu0 %v227
        %237 = vmatpush.msra.mxu0 %v226
        %238 = vmatpush.msra.mxu0 %v225
        %239 = vmatpush.msra.mxu0 %v224
        %240 = vmatpush.msra.mxu0 %v223
        %241 = vmatpush.msra.mxu0 %v222
        %242 = vmatpush.msra.mxu0 %v221
        %243 = vmatpush.msra.mxu0 %v220
        %244 = vmatpush.msra.mxu0 %v219
        %245 = vmatpush.msra.mxu0 %v218
        %246 = vmatpush.msra.mxu0 %v217
        %247 = vmatpush.msra.mxu0 %v216
        %248 = vmatpush.msra.mxu0 %v215
        %249 = vmatpush.msra.mxu0 %v214
        %250 = vmatmul.f32.gmra.mxu0 %v210
        %v251 = vpop.f32.mrf.mxu0
        %v252 = vadd.f32 %v232, %v251
        %253 = vmatmul.f32.gmra.mxu0 %v211
        %v254 = vpop.f32.mrf.mxu0
        %v255 = vadd.f32 %v232, %v254
        %256 = vmatmul.f32.gmra.mxu0 %v212
        %v257 = vpop.f32.mrf.mxu0
        %v258 = vadd.f32 %v232, %v257
        %259 = vmatmul.f32.gmra.mxu0 %v213
        %v260 = vpop.f32.mrf.mxu0
        %v261 = vadd.f32 %v232, %v260
        %262 = vdwg.mxu0
        %263 = vst [vmem:[%s207] sm:$0xff] %v252
        %264 = vst [vmem:[%s207 + $0x8] sm:$0xff] %v255
        %265 = vst [vmem:[%s207 + $0x10] sm:$0xff] %v258
        %266 = vst [vmem:[%s207 + $0x18] sm:$0xff] %v261
        %s267 = sand.u32 %s97, 1
        %s268 = scalar_lea.sflag [#allocation4], %s267
        %s269 = sand.u32 %s97, 1
        %s270 = smul.addr %s269, 32
        %s271 = scalar_lea.vmem [#allocation7], %s270
        // Predicated region
        $region41: #{tpu_custom_call.1} parent=31 // pred_check
          %p272 = pneg %p107
        $region42: #{tpu_custom_call.1} parent=31 // pred_check_branch
          %274 = sbr.rel (%p272) target = $region44
        $region43: #{tpu_custom_call.1} parent=31 // pred_region
          %s275 = smul.u32 4, %s21
          %277 = vsyncadd %s268, 0
          %s278 = smul.addr %s275, 8
          %s279 = scalar_lea.hbm %s3, %s278
          %s280 = sshll.u32 %s271, 4
          %s281 = int_to_ptr.vmem [resolvable:$true] %s280
          %s282 = sshll.u32 %s279, 4
          %s283 = int_to_ptr.hbm [resolvable:$true] %s282
          %288 = dma.vmem_to_hbm [thread:$0]  %s281, 512, %s283, %s268, 128, 128, 8
        $region44: #{tpu_custom_call.1} parent=31 // pred_fallthru
          _
      $region32: #{tpu_custom_call.1} parent=5 // pred_fallthru
        _
      %p289 = scmp.le.s32.totalorder 2, %s16
      // Predicated region
      $region45: #{tpu_custom_call.1} parent=5 // pred_check
        %p290 = pneg %p289
      $region46: #{tpu_custom_call.1} parent=5 // pred_check_branch
        %292 = sbr.rel (%p290) target = $region48
      $region47: #{tpu_custom_call.1} parent=5 // pred_region
        %s293 = ssub.s32 %s16, 2
        // Predicated region
        $region49: #{tpu_custom_call.1} parent=47 // pred_check
          %p294 = pneg %p113
        $region50: #{tpu_custom_call.1} parent=47 // pred_check_branch
          %296 = sbr.rel (%p294) target = $region52
        $region51: #{tpu_custom_call.1} parent=47 // pred_region
          %s297 = sand.u32 %s98, 1
          %s298 = scalar_lea.sflag [#allocation4], %s297
          %s299 = sand.u32 %s98, 1
          %s300 = smul.addr %s299, 32
          %s301 = scalar_lea.vmem [#allocation7], %s300
          %303 = dma.done %s298, 512
        $region52: #{tpu_custom_call.1} parent=47 // pred_fallthru
          _
      $region48: #{tpu_custom_call.1} parent=5 // pred_fallthru
        _
    $region6: #{tpu_custom_call.1} parent=1 // loop_footer
      %s20 = sadd.s32 1, %s16
    $region7: #{tpu_custom_call.1} parent=1 // loop_footer_branch
      %15 = sbr.rel target = $region3
    $region8: #{tpu_custom_call.1} parent=1 // loop_exit
      _
    %304 = vsyncpa [#allocation3], 1
    %s305 = scalar_lea.sflag [#allocation3], 1
    %306 = vsyncpa %s305, 1
    %307 = vsyncpa [#allocation6], 1
    %308 = vsyncpa [#allocation4], 1
    %s309 = scalar_lea.sflag [#allocation4], 1
    %310 = vsyncpa %s309, 1

</llo_original>
